<compile_context>
chip_gen: v7x
topology: tpu7x:2x2x1
jax: 0.10.0
libtpu: 0.0.40
codegen_flags: <defaults>
</compile_context>

<pallas_src>
import functools

import jax
import jax.numpy as jnp
from jax.experimental import pallas as pl
from jax.experimental.pallas import tpu as pltpu


def _round_up(n, m):
    return ((n + m - 1) // m) * m


def _conv1d_bank_kernel(TB, L_pad, D, C_pad,
                        x_ref,      # (TB, L_pad, D)  input tile, MXU dtype
                        mask_ref,   # (TB, L_pad, 1)  f32 validity mask {0,1}
                        w_ref,      # (4*D, C_pad)    packed conv weights, MXU dtype
                        b_ref,      # (1, C_pad)      packed bias, f32
                        o_ref):     # (TB, C_pad)     output tile, f32
    M = TB * L_pad
    x = x_ref[...].reshape(M, D)                 # free reshape: L_pad % 8 == 0

    # Bias pre-loaded into the f32 accumulator (one broadcast per grid step).
    acc = jnp.broadcast_to(b_ref[...], (M, C_pad))

    # Tap j of conv_k multiplies x[t + j]; shift via XLU roll (no concat / VMEM copies).
    # Roll wrap-around only contaminates rows t >= L_pad - 3 >= L, which the epilogue
    # mask always zeroes (x_l <= L), so the rolled operand needs no masking.
    for j in range(4):
        xs = x if j == 0 else pltpu.roll(x, shift=M - j, axis=0)
        acc = acc + jnp.dot(xs, w_ref[j * D:(j + 1) * D, :],
                            preferred_element_type=jnp.float32)

    # ReLU + masked max over time.  Post-ReLU values are >= 0, so multiplying invalid
    # timesteps by 0 is equivalent to the reference's -inf mask for any x_l >= 1.
    # TODO(synk): rows with x_l == 0 produce 0.0 instead of the reference's -inf (empty max).
    y = jnp.maximum(acc, 0.0).reshape(TB, L_pad, C_pad)
    o_ref[...] = jnp.max(y * mask_ref[...], axis=1)


def pack_conv_bank(w1, w2, w3, w4, bias, C_pad, mxu_dtype=jnp.bfloat16):
    """Pack the 4 conv kernels into one zero-padded (4*D, C_pad) matrix + (1, C_pad) bias.

    Row block j (rows j*D:(j+1)*D) is tap j (multiplies x[t + j]); column block k-1 is
    conv_k's output channels (same channel order as the torch concat).  Columns beyond
    4*out_q are zero padding so output stores are lane-dense (multiple of 128).
    """
    D, out_q = w1.shape[1], w1.shape[2]
    W = jnp.zeros((4 * D, C_pad), jnp.float32)
    for k, w in enumerate((w1, w2, w3, w4), start=1):          # w: (k, D, out_q)
        for j in range(k):
            W = W.at[j * D:(j + 1) * D, (k - 1) * out_q:k * out_q].set(w[j])
    b = jnp.zeros((1, C_pad), jnp.float32).at[0, :4 * out_q].set(bias.reshape(-1))
    return W.astype(mxu_dtype), b


def _default_batch_tile(B, L_pad):
    # Smallest TB (multiple of 8, dividing B) with MXU M = TB*L_pad >= 256; this also
    # guarantees >= 2 grid steps at real sizes (pipelining / v7x megacore).  Tiny B ->
    # fall back to the full batch (block == full dim satisfies the tiling constraint).
    for tb in range(8, B, 8):
        if B % tb == 0 and tb * L_pad >= 256:
            return tb
    return B


def conv1d_bank(x, x_l, w1, w2, w3, w4, bias, *,
                mxu_dtype=jnp.bfloat16, batch_tile=None):
    """x: (B, L, D) f32, x_l: (B,) int, wk: (k, D, out_q), bias: (4, out_q) -> (B, 4*out_q) f32."""
    B, L, D = x.shape
    out_q = bias.shape[1]
    C = 4 * out_q
    C_pad = _round_up(C, 128)

    # Pad time to a multiple of 8 with >= 3 extra zero rows: they double as the conv's
    # zero padding and guarantee the in-kernel roll wrap only hits invalid rows.
    L_pad = _round_up(L + 3, 8)
    x = x.astype(mxu_dtype)                      # bf16 operands by default: halves DMA
    x = jnp.concatenate([x, jnp.zeros((B, L_pad - L, D), x.dtype)], axis=1)

    TB = _default_batch_tile(B, L_pad) if batch_tile is None else batch_tile
    if TB != B:
        assert B % TB == 0 and TB % 8 == 0, \
            "batch_tile must divide B and be a multiple of 8 (TPU sublane tiling)"

    # Validity mask built once in the wrapper (removes scalar x_l handling from the kernel).
    mask = (jnp.arange(L_pad)[None, :] < x_l.astype(jnp.int32)[:, None])
    mask = mask.astype(jnp.float32)[:, :, None]                  # (B, L_pad, 1)

    W_packed, bias_packed = pack_conv_bank(w1, w2, w3, w4, bias, C_pad, mxu_dtype)

    kernel = functools.partial(_conv1d_bank_kernel, TB, L_pad, D, C_pad)

    # Per-step VMEM estimate (double-buffered tiles + resident weights + f32 intermediates);
    # only raise the scoped limit when the default would actually be exceeded.
    ebytes = jnp.dtype(mxu_dtype).itemsize
    vmem_est = (2 * TB * L_pad * D * ebytes            # x tiles (double-buffered)
                + 2 * TB * L_pad * 128 * 4             # mask tiles (lane-padded)
                + 4 * D * C_pad * ebytes + C_pad * 4   # resident weights + bias
                + 2 * TB * C_pad * 4                   # output tiles
                + 3 * TB * L_pad * C_pad * 4)          # acc / relu / rolled operands
    vmem_limit = (int(min(vmem_est * 2, 100 * 1024 * 1024))
                  if vmem_est > 16 * 1024 * 1024 else None)

    grid_spec = pltpu.PrefetchScalarGridSpec(
        num_scalar_prefetch=0,
        grid=(B // TB,),
        in_specs=[
            pl.BlockSpec((TB, L_pad, D), lambda b: (b, 0, 0)),   # input batch tile
            pl.BlockSpec((TB, L_pad, 1), lambda b: (b, 0, 0)),   # validity mask tile
            pl.BlockSpec((4 * D, C_pad), lambda b: (0, 0)),      # packed weights (resident)
            pl.BlockSpec((1, C_pad), lambda b: (0, 0)),          # packed bias (resident)
        ],
        out_specs=pl.BlockSpec((TB, C_pad), lambda b: (b, 0)),   # lane-dense output tile
    )

    out_padded = pl.pallas_call(
        kernel,
        out_shape=jax.ShapeDtypeStruct((B, C_pad), jnp.float32),
        grid_spec=grid_spec,
        compiler_params=pltpu.CompilerParams(
            dimension_semantics=("parallel",),       # batch tiles are independent
            vmem_limit_bytes=vmem_limit),
    )(x, mask, W_packed, bias_packed)

    return out_padded[:, :C]


def reference(x, x_l, ws, bias):
    """Pure-JAX reference of the PyTorch forward (for sanity checking)."""
    B, L, D = x.shape
    xp = jnp.concatenate([x, jnp.zeros((B, 3, D), x.dtype)], axis=1)
    outs = []
    for k in range(1, 5):
        w = ws[k - 1]
        acc = bias[k - 1][None, None, :]
        for j in range(k):
            acc = acc + jnp.einsum('btd,do->bto', xp[:, j:j + L, :], w[j])
        outs.append(jax.nn.relu(acc))
    out = jnp.concatenate(outs, axis=-1)               # (B, L, out_dim)
    t = jnp.arange(L)[None, :, None]
    masked = jnp.where(t < x_l[:, None, None], out, -jnp.inf)
    return jnp.max(masked, axis=1)                     # (B, out_dim)


if __name__ == "__main__":
    B, L, D = 2, 8, 32          # batch, seq len, n_dim
    OUT_DIM = 16                # module's out_dim; each conv produces OUT_DIM // 4 channels
    out_q = OUT_DIM // 4

    key = jax.random.PRNGKey(0)
    kx, k1, k2, k3, k4, kb = jax.random.split(key, 6)

    x = jax.random.normal(kx, (B, L, D), dtype=jnp.float32)
    x_l = jnp.array([5, 8], dtype=jnp.int32)           # valid lengths per batch element

    # Conv weights stored as (kernel_size, in_dim, out_q) == torch weight (out, in, k)
    # transposed to the layout this kernel consumes; biases stacked as (4, out_q).
    w1 = jax.random.normal(k1, (1, D, out_q), dtype=jnp.float32) * 0.1
    w2 = jax.random.normal(k2, (2, D, out_q), dtype=jnp.float32) * 0.1
    w3 = jax.random.normal(k3, (3, D, out_q), dtype=jnp.float32) * 0.1
    w4 = jax.random.normal(k4, (4, D, out_q), dtype=jnp.float32) * 0.1
    bias = jax.random.normal(kb, (4, out_q), dtype=jnp.float32) * 0.1

    ref = reference(x, x_l, (w1, w2, w3, w4), bias)

    # f32 MXU operands (exact match vs. reference; safe on all generations incl. v5e).
    out_f32 = jax.block_until_ready(
        conv1d_bank(x, x_l, w1, w2, w3, w4, bias, mxu_dtype=jnp.float32))
    assert out_f32.shape == (B, OUT_DIM)
    assert jnp.allclose(out_f32, ref, atol=1e-5, rtol=1e-5), "f32 kernel mismatch vs reference"

    # Default path: bf16 MXU operands + bf16 input DMA; f32 accumulate + f32 epilogue.
    out_bf16 = jax.block_until_ready(conv1d_bank(x, x_l, w1, w2, w3, w4, bias))
    assert out_bf16.shape == (B, OUT_DIM)
    assert jnp.allclose(out_bf16, ref, atol=5e-2, rtol=5e-2), "bf16 kernel mismatch vs reference"

    print("KERNEL_OK")
</pallas_src>

<mosaic_0001>
module attributes {stable_mosaic.version = 11 : i64} {
  func.func @_conv1d_bank_kernel(%arg0: i32, %arg1: memref<2x16x32xf32, #tpu.memory_space<vmem>>, %arg2: memref<2x16x1xf32, #tpu.memory_space<vmem>>, %arg3: memref<128x128xf32, #tpu.memory_space<vmem>>, %arg4: memref<1x128xf32, #tpu.memory_space<vmem>>, %arg5: memref<2x128xf32, #tpu.memory_space<vmem>>) attributes {dimension_semantics = [#tpu.dimension_semantics<parallel>], iteration_bounds = array<i64: 1>, scalar_prefetch = 0 : i64, scratch_operands = 0 : i64, tpu.core_type = #tpu.core_type<tc>, window_params = [{transform_indices = @transform_0, window_bounds = array<i64: 2, 16, 32>}, {transform_indices = @transform_1, window_bounds = array<i64: 2, 16, 1>}, {pipeline_mode = #tpu.pipeline_mode<synchronous>, transform_indices = @transform_2, window_bounds = array<i64: 128, 128>}, {pipeline_mode = #tpu.pipeline_mode<synchronous>, transform_indices = @transform_3, window_bounds = array<i64: 1, 128>}, {transform_indices = @transform_4, window_bounds = array<i64: 2, 128>}]} {
    %c0 = arith.constant 0 : index
    %c0_0 = arith.constant 0 : index
    %c0_1 = arith.constant 0 : index
    %0 = vector.load %arg1[%c0, %c0_0, %c0_1] : memref<2x16x32xf32, #tpu.memory_space<vmem>>, vector<2x16x32xf32>
    %1 = vector.shape_cast %0 : vector<2x16x32xf32> to vector<32x32xf32>
    %c0_2 = arith.constant 0 : index
    %c0_3 = arith.constant 0 : index
    %2 = vector.load %arg4[%c0_2, %c0_3] : memref<1x128xf32, #tpu.memory_space<vmem>>, vector<1x128xf32>
    %3 = vector.shape_cast %2 : vector<1x128xf32> to vector<1x128xf32>
    %4 = vector.broadcast %3 : vector<1x128xf32> to vector<32x128xf32>
    %c0_4 = arith.constant 0 : index
    %c0_5 = arith.constant 0 : index
    %5 = vector.load %arg3[%c0_4, %c0_5] : memref<128x128xf32, #tpu.memory_space<vmem>>, vector<32x128xf32>
    %cst = arith.constant dense<0.000000e+00> : vector<32x128xf32>
    %6 = tpu.matmul %1, %5, %cst {dimension_numbers = #tpu.dot_dimension_numbers<[1], [0], [0], [1], [0, 0, 1, 1], [], []>} : vector<32x32xf32>, vector<32x128xf32>, vector<32x128xf32> -> vector<32x128xf32>
    %7 = arith.addf %4, %6 : vector<32x128xf32>
    %c31_i32 = arith.constant 31 : i32
    %8 = tpu.dynamic_rotate %1 by %c31_i32 dim 0 : vector<32x32xf32>, i32 -> vector<32x32xf32>
    %c32 = arith.constant 32 : index
    %c0_6 = arith.constant 0 : index
    %9 = vector.load %arg3[%c32, %c0_6] : memref<128x128xf32, #tpu.memory_space<vmem>>, vector<32x128xf32>
    %cst_7 = arith.constant dense<0.000000e+00> : vector<32x128xf32>
    %10 = tpu.matmul %8, %9, %cst_7 {dimension_numbers = #tpu.dot_dimension_numbers<[1], [0], [0], [1], [0, 0, 1, 1], [], []>} : vector<32x32xf32>, vector<32x128xf32>, vector<32x128xf32> -> vector<32x128xf32>
    %11 = arith.addf %7, %10 : vector<32x128xf32>
    %c30_i32 = arith.constant 30 : i32
    %12 = tpu.dynamic_rotate %1 by %c30_i32 dim 0 : vector<32x32xf32>, i32 -> vector<32x32xf32>
    %c64 = arith.constant 64 : index
    %c0_8 = arith.constant 0 : index
    %13 = vector.load %arg3[%c64, %c0_8] : memref<128x128xf32, #tpu.memory_space<vmem>>, vector<32x128xf32>
    %cst_9 = arith.constant dense<0.000000e+00> : vector<32x128xf32>
    %14 = tpu.matmul %12, %13, %cst_9 {dimension_numbers = #tpu.dot_dimension_numbers<[1], [0], [0], [1], [0, 0, 1, 1], [], []>} : vector<32x32xf32>, vector<32x128xf32>, vector<32x128xf32> -> vector<32x128xf32>
    %15 = arith.addf %11, %14 : vector<32x128xf32>
    %c29_i32 = arith.constant 29 : i32
    %16 = tpu.dynamic_rotate %1 by %c29_i32 dim 0 : vector<32x32xf32>, i32 -> vector<32x32xf32>
    %c96 = arith.constant 96 : index
    %c0_10 = arith.constant 0 : index
    %17 = vector.load %arg3[%c96, %c0_10] : memref<128x128xf32, #tpu.memory_space<vmem>>, vector<32x128xf32>
    %cst_11 = arith.constant dense<0.000000e+00> : vector<32x128xf32>
    %18 = tpu.matmul %16, %17, %cst_11 {dimension_numbers = #tpu.dot_dimension_numbers<[1], [0], [0], [1], [0, 0, 1, 1], [], []>} : vector<32x32xf32>, vector<32x128xf32>, vector<32x128xf32> -> vector<32x128xf32>
    %19 = arith.addf %15, %18 : vector<32x128xf32>
    %cst_12 = arith.constant 0.000000e+00 : f32
    %20 = vector.broadcast %cst_12 : f32 to vector<32x128xf32>
    %21 = arith.maximumf %19, %20 : vector<32x128xf32>
    %22 = vector.shape_cast %21 : vector<32x128xf32> to vector<2x16x128xf32>
    %c0_13 = arith.constant 0 : index
    %c0_14 = arith.constant 0 : index
    %c0_15 = arith.constant 0 : index
    %23 = vector.load %arg2[%c0_13, %c0_14, %c0_15] : memref<2x16x1xf32, #tpu.memory_space<vmem>>, vector<2x16x1xf32>
    %24 = vector.broadcast %23 : vector<2x16x1xf32> to vector<2x16x128xf32>
    %25 = arith.mulf %22, %24 : vector<2x16x128xf32>
    %cst_16 = arith.constant dense<0xFF800000> : vector<2x128xf32>
    %26 = vector.multi_reduction <maximumf>, %25, %cst_16 [1] : vector<2x16x128xf32> to vector<2x128xf32>
    %c0_17 = arith.constant 0 : index
    %c0_18 = arith.constant 0 : index
    %27 = vector.load %arg5[%c0_17, %c0_18] : memref<2x128xf32, #tpu.memory_space<vmem>>, vector<2x128xf32>
    tpu.vector_store %arg5[%c0_17, %c0_18], %26 {strides = array<i32>} : memref<2x128xf32, #tpu.memory_space<vmem>>, vector<2x128xf32>,
    return
  }
  func.func @transform_0(%arg0: i32) -> (i32, i32, i32) {
    %c0_i32 = arith.constant 0 : i32
    %c0_i32_0 = arith.constant 0 : i32
    %c0_i32_1 = arith.constant 0 : i32
    return %arg0, %c0_i32, %c0_i32_0 : i32, i32, i32
  }
  func.func @transform_1(%arg0: i32) -> (i32, i32, i32) {
    %c0_i32 = arith.constant 0 : i32
    %c0_i32_0 = arith.constant 0 : i32
    %c0_i32_1 = arith.constant 0 : i32
    return %arg0, %c0_i32, %c0_i32_0 : i32, i32, i32
  }
  func.func @transform_2(%arg0: i32) -> (i32, i32) {
    %c0_i32 = arith.constant 0 : i32
    %c0_i32_0 = arith.constant 0 : i32
    %c0_i32_1 = arith.constant 0 : i32
    return %c0_i32, %c0_i32_0 : i32, i32
  }
  func.func @transform_3(%arg0: i32) -> (i32, i32) {
    %c0_i32 = arith.constant 0 : i32
    %c0_i32_0 = arith.constant 0 : i32
    %c0_i32_1 = arith.constant 0 : i32
    return %c0_i32, %c0_i32_0 : i32, i32
  }
  func.func @transform_4(%arg0: i32) -> (i32, i32) {
    %c0_i32 = arith.constant 0 : i32
    %c0_i32_0 = arith.constant 0 : i32
    return %arg0, %c0_i32 : i32, i32
  }
}

</mosaic_0001>

<llo_original>
// kernel: tpu_custom_call.1
$region0: #{tpu_custom_call.1}
  #allocation0 [shape = 'u32[]', space=smem, size = 0x4, offset = 0x4, fixed_abs, tag = 'smem constant byte address 0x4 - core index']
  #allocation1 [shape = 'u32[144,128]{1,0:T(1,128)}', space=vmem, size = 0x12000, scoped, tag = 'internal scratch']
  %s0 = inlined_call_operand.vmem [shape: f32[2,16,32], index: 0, kind: input, shape index: {}]
  %s1 = inlined_call_operand.vmem [shape: f32[2,16,1], index: 1, kind: input, shape index: {}]
  %s2 = inlined_call_operand.hbm [shape: f32[128,128], index: 2, kind: input, shape index: {}]
  %s3 = inlined_call_operand.vmem [shape: f32[1,128], index: 3, kind: input, shape index: {}]
  %s4 = inlined_call_operand.hbm [shape: f32[2,128], index: 4, kind: output, shape index: {}]
  %s5 = sld [smem:[#allocation0]]
  $region30: #{tpu_custom_call.1} parent=0
    _
  %s7 = ssub.s32 1, %s5
  %s8 = scalar_select 0, %s7, %s5
  $region1: #{tpu_custom_call.1} parent=0
    #allocation2 [shape = 'u8[65536]{0}', space=vmem, size = 0x10000, scoped, tag = 'input window, operand 2, single buffered']
    #allocation3 [shape = 's32[1]{0}', space=sflag, size = 0x4, scoped, tag = 'scoped memory for tpu_custom_call.1']
    #allocation4 [shape = 's32[1]{0}', space=sflag, size = 0x4, scoped, tag = 'scoped memory for tpu_custom_call.1']
    #allocation5 [shape = 'u8[1024]{0}', space=vmem, size = 0x400, scoped, tag = 'output window, operand 0, single buffered']
    %9 = vsyncpa [#allocation3], 0
    %10 = vsyncpa [#allocation4], 0
    // Predicated region
    $region2: #{tpu_custom_call.1} parent=1 // pred_check
      _
    $region3: #{tpu_custom_call.1} parent=1 // pred_check_branch
      %12 = sbr.rel (0) target = $region5
    $region4: #{tpu_custom_call.1} parent=1 // pred_region
      _
    $region5: #{tpu_custom_call.1} parent=1 // pred_fallthru
      _
    // Predicated region
    $region6: #{tpu_custom_call.1} parent=1 // pred_check
      _
    $region7: #{tpu_custom_call.1} parent=1 // pred_check_branch
      %14 = sbr.rel (0) target = $region9
    $region8: #{tpu_custom_call.1} parent=1 // pred_region
      _
    $region9: #{tpu_custom_call.1} parent=1 // pred_fallthru
      _
    // Predicated region
    $region10: #{tpu_custom_call.1} parent=1 // pred_check
      _
    $region11: #{tpu_custom_call.1} parent=1 // pred_check_branch
      %16 = sbr.rel (0) target = $region13
    $region12: #{tpu_custom_call.1} parent=1 // pred_region
      %s18 = ssub.s32 2048, 2048
      %19 = vsyncadd [#allocation3], %s18
      %s20 = sshll.u32 [#allocation2], 4
      %s21 = int_to_ptr.vmem [resolvable:$true] %s20
      %26 = dma.hbm_to_vmem [thread:$0]  %s2, 2048, %s21, [#allocation3], 128, 128, 8
    $region13: #{tpu_custom_call.1} parent=1 // pred_fallthru
      _
    // Predicated region
    $region14: #{tpu_custom_call.1} parent=1 // pred_check
      _
    $region15: #{tpu_custom_call.1} parent=1 // pred_check_branch
      %28 = sbr.rel (0) target = $region17
    $region16: #{tpu_custom_call.1} parent=1 // pred_region
      _
    $region17: #{tpu_custom_call.1} parent=1 // pred_fallthru
      _
    // Predicated region
    $region18: #{tpu_custom_call.1} parent=1 // pred_check
      _
    $region19: #{tpu_custom_call.1} parent=1 // pred_check_branch
      %30 = sbr.rel (0) target = $region21
    $region20: #{tpu_custom_call.1} parent=1 // pred_region
      %31 = dma.done [#allocation3], 2048
    $region21: #{tpu_custom_call.1} parent=1 // pred_fallthru
      _
    %v32 = vld [vmem:[%s0] sm:$0xff]
    %v33 = vld [vmem:[%s0 + $0x8] sm:$0xff]
    %v34 = vld [vmem:[%s0 + $0x10] sm:$0xff]
    %v35 = vld [vmem:[%s0 + $0x18] sm:$0xff]
    %v36 = vld [vmem:[%s3] sm:$0x1]
    %v38 = vlaneseq
    %v39 = vshrl.u32 %v38, 7
    %v40 = vsub.s32 0, %v39
    %v41 = vrot.slane %v36, %v40
    %v43 = vld [vmem:[#allocation2] sm:$0xff]
    %v44 = vld [vmem:[#allocation2 + $0x8] sm:$0xff]
    %v45 = vld [vmem:[#allocation2 + $0x10] sm:$0xff]
    %v46 = vld [vmem:[#allocation2 + $0x18] sm:$0xff]
    %vm47 = vcmask 261120
    %v49 = vsel %vm47, %v32, 0
    %v52 = vsel %vm47, %v33, 0
    %v55 = vsel %vm47, %v34, 0
    %v58 = vsel %vm47, %v35, 0
    %60 = vmatprep.subr.mxu0 0.0
    %61 = vmatpush1.msra.mxu0 %v43
    %62 = vmatprep.subr.mxu0 0.0
    %63 = vmatpush1.msra.mxu0 %v44
    %64 = vmatprep.subr.mxu0 0.0
    %65 = vmatpush1.msra.mxu0 %v45
    %66 = vmatprep.subr.mxu0 0.0
    %67 = vmatpush1.msra.mxu0 %v46
    %68 = vmatprep.subr.mxu0 0.0
    %69 = vmatpush1.msra.mxu0 0.0
    %70 = vmatprep.subr.mxu0 0.0
    %71 = vmatpush1.msra.mxu0 0.0
    %72 = vmatprep.subr.mxu0 0.0
    %73 = vmatpush1.msra.mxu0 0.0
    %74 = vmatprep.subr.mxu0 0.0
    %75 = vmatpush1.msra.mxu0 0.0
    %76 = vmatprep.subr.mxu0 0.0
    %77 = vmatpush1.msra.mxu0 0.0
    %78 = vmatprep.subr.mxu0 0.0
    %79 = vmatpush1.msra.mxu0 0.0
    %80 = vmatprep.subr.mxu0 0.0
    %81 = vmatpush1.msra.mxu0 0.0
    %82 = vmatprep.subr.mxu0 0.0
    %83 = vmatpush1.msra.mxu0 0.0
    %84 = vmatprep.subr.mxu0 0.0
    %85 = vmatpush1.msra.mxu0 0.0
    %86 = vmatprep.subr.mxu0 0.0
    %87 = vmatpush1.msra.mxu0 0.0
    %88 = vmatprep.subr.mxu0 0.0
    %89 = vmatpush1.msra.mxu0 0.0
    %90 = vmatprep.subr.mxu0 0.0
    %91 = vmatpush1.msra.mxu0 0.0
    %92 = vmatprep.subr.mxu0 0.0
    %93 = vmatpush1.msra.mxu0 0.0
    %94 = vmatprep.subr.mxu0 0.0
    %95 = vmatpush1.msra.mxu0 0.0
    %96 = vmatprep.subr.mxu0 0.0
    %97 = vmatpush1.msra.mxu0 0.0
    %98 = vmatprep.subr.mxu0 0.0
    %99 = vmatpush1.msra.mxu0 0.0
    %100 = vmatprep.subr.mxu0 0.0
    %101 = vmatpush1.msra.mxu0 0.0
    %102 = vmatprep.subr.mxu0 0.0
    %103 = vmatpush1.msra.mxu0 0.0
    %104 = vmatprep.subr.mxu0 0.0
    %105 = vmatpush1.msra.mxu0 0.0
    %106 = vmatprep.subr.mxu0 0.0
    %107 = vmatpush1.msra.mxu0 0.0
    %108 = vmatprep.subr.mxu0 0.0
    %109 = vmatpush1.msra.mxu0 0.0
    %110 = vmatprep.subr.mxu0 0.0
    %111 = vmatpush1.msra.mxu0 0.0
    %112 = vmatprep.subr.mxu0 0.0
    %113 = vmatpush1.msra.mxu0 0.0
    %114 = vmatprep.subr.mxu0 0.0
    %115 = vmatpush1.msra.mxu0 0.0
    %116 = vmatprep.subr.mxu0 0.0
    %117 = vmatpush1.msra.mxu0 0.0
    %118 = vmatprep.subr.mxu0 0.0
    %119 = vmatpush1.msra.mxu0 0.0
    %120 = vmatprep.subr.mxu0 0.0
    %121 = vmatpush1.msra.mxu0 0.0
    %122 = vmatprep.subr.mxu0 0.0
    %123 = vmatpush1.msra.mxu0 0.0
    %124 = vmatprep.mubr.f32.mxu0 0.0
    %125 = vmatmul.mubr.f32.gmra.mrb[0].mxu0 %v49
    %v126 = vpop.f32.mrb[0].mxu0
    %v127 = vadd.f32 0.0, %v126
    %v128 = vpop.f32.mrb[0].mxu0
    %129 = vmatprep.mubr.f32.mxu0 0.0
    %130 = vmatmul.mubr.f32.gmra.mrb[0].mxu0 %v52
    %v131 = vpop.f32.mrb[0].mxu0
    %v132 = vadd.f32 0.0, %v131
    %v133 = vpop.f32.mrb[0].mxu0
    %134 = vmatprep.mubr.f32.mxu0 0.0
    %135 = vmatmul.mubr.f32.gmra.mrb[0].mxu0 %v55
    %v136 = vpop.f32.mrb[0].mxu0
    %v137 = vadd.f32 0.0, %v136
    %v138 = vpop.f32.mrb[0].mxu0
    %139 = vmatprep.mubr.f32.mxu0 0.0
    %140 = vmatmul.mubr.f32.gmra.mrb[0].mxu0 %v58
    %v141 = vpop.f32.mrb[0].mxu0
    %v142 = vadd.f32 0.0, %v141
    %v143 = vpop.f32.mrb[0].mxu0
    %144 = vdwg.mxu0
    %v145 = vadd.f32 %v41, %v127
    %v146 = vadd.f32 %v41, %v132
    %v147 = vadd.f32 %v41, %v137
    %v148 = vadd.f32 %v41, %v142
    %v149 = vrot.slane %v32, 1
    %v150 = vrot.slane %v33, 1
    %v151 = vrot.slane %v34, 1
    %v152 = vrot.slane %v35, 1
    %v153 = vlaneseq
    %v154 = vshrl.u32 %v153, 7
    %vm155 = vcmp.lt.s32.totalorder %v154, 7
    %v156 = vsel %vm155, %v151, %v152
    %v157 = vsel %vm155, %v150, %v151
    %v158 = vsel %vm155, %v149, %v150
    %v159 = vsel %vm155, %v152, %v149
    %v160 = vld [vmem:[#allocation2 + $0x20] sm:$0xff]
    %v161 = vld [vmem:[#allocation2 + $0x28] sm:$0xff]
    %v162 = vld [vmem:[#allocation2 + $0x30] sm:$0xff]
    %v163 = vld [vmem:[#allocation2 + $0x38] sm:$0xff]
    %v165 = vsel %vm47, %v158, 0
    %v168 = vsel %vm47, %v157, 0
    %v171 = vsel %vm47, %v156, 0
    %v174 = vsel %vm47, %v159, 0
    %176 = vmatprep.subr.mxu0 0.0
    %177 = vmatpush1.msra.mxu0 %v160
    %178 = vmatprep.subr.mxu0 0.0
    %179 = vmatpush1.msra.mxu0 %v161
    %180 = vmatprep.subr.mxu0 0.0
    %181 = vmatpush1.msra.mxu0 %v162
    %182 = vmatprep.subr.mxu0 0.0
    %183 = vmatpush1.msra.mxu0 %v163
    %184 = vmatprep.subr.mxu0 0.0
    %185 = vmatpush1.msra.mxu0 0.0
    %186 = vmatprep.subr.mxu0 0.0
    %187 = vmatpush1.msra.mxu0 0.0
    %188 = vmatprep.subr.mxu0 0.0
    %189 = vmatpush1.msra.mxu0 0.0
    %190 = vmatprep.subr.mxu0 0.0
    %191 = vmatpush1.msra.mxu0 0.0
    %192 = vmatprep.subr.mxu0 0.0
    %193 = vmatpush1.msra.mxu0 0.0
    %194 = vmatprep.subr.mxu0 0.0
    %195 = vmatpush1.msra.mxu0 0.0
    %196 = vmatprep.subr.mxu0 0.0
    %197 = vmatpush1.msra.mxu0 0.0
    %198 = vmatprep.subr.mxu0 0.0
    %199 = vmatpush1.msra.mxu0 0.0
    %200 = vmatprep.subr.mxu0 0.0
    %201 = vmatpush1.msra.mxu0 0.0
    %202 = vmatprep.subr.mxu0 0.0
    %203 = vmatpush1.msra.mxu0 0.0
    %204 = vmatprep.subr.mxu0 0.0
    %205 = vmatpush1.msra.mxu0 0.0
    %206 = vmatprep.subr.mxu0 0.0
    %207 = vmatpush1.msra.mxu0 0.0
    %208 = vmatprep.subr.mxu0 0.0
    %209 = vmatpush1.msra.mxu0 0.0
    %210 = vmatprep.subr.mxu0 0.0
    %211 = vmatpush1.msra.mxu0 0.0
    %212 = vmatprep.subr.mxu0 0.0
    %213 = vmatpush1.msra.mxu0 0.0
    %214 = vmatprep.subr.mxu0 0.0
    %215 = vmatpush1.msra.mxu0 0.0
    %216 = vmatprep.subr.mxu0 0.0
    %217 = vmatpush1.msra.mxu0 0.0
    %218 = vmatprep.subr.mxu0 0.0
    %219 = vmatpush1.msra.mxu0 0.0
    %220 = vmatprep.subr.mxu0 0.0
    %221 = vmatpush1.msra.mxu0 0.0
    %222 = vmatprep.subr.mxu0 0.0
    %223 = vmatpush1.msra.mxu0 0.0
    %224 = vmatprep.subr.mxu0 0.0
    %225 = vmatpush1.msra.mxu0 0.0
    %226 = vmatprep.subr.mxu0 0.0
    %227 = vmatpush1.msra.mxu0 0.0
    %228 = vmatprep.subr.mxu0 0.0
    %229 = vmatpush1.msra.mxu0 0.0
    %230 = vmatprep.subr.mxu0 0.0
    %231 = vmatpush1.msra.mxu0 0.0
    %232 = vmatprep.subr.mxu0 0.0
    %233 = vmatpush1.msra.mxu0 0.0
    %234 = vmatprep.subr.mxu0 0.0
    %235 = vmatpush1.msra.mxu0 0.0
    %236 = vmatprep.subr.mxu0 0.0
    %237 = vmatpush1.msra.mxu0 0.0
    %238 = vmatprep.subr.mxu0 0.0
    %239 = vmatpush1.msra.mxu0 0.0
    %240 = vmatprep.mubr.f32.mxu0 0.0
    %241 = vmatmul.mubr.f32.gmra.mrb[0].mxu0 %v165
    %v242 = vpop.f32.mrb[0].mxu0
    %v243 = vadd.f32 0.0, %v242
    %v244 = vpop.f32.mrb[0].mxu0
    %245 = vmatprep.mubr.f32.mxu0 0.0
    %246 = vmatmul.mubr.f32.gmra.mrb[0].mxu0 %v168
    %v247 = vpop.f32.mrb[0].mxu0
    %v248 = vadd.f32 0.0, %v247
    %v249 = vpop.f32.mrb[0].mxu0
    %250 = vmatprep.mubr.f32.mxu0 0.0
    %251 = vmatmul.mubr.f32.gmra.mrb[0].mxu0 %v171
    %v252 = vpop.f32.mrb[0].mxu0
    %v253 = vadd.f32 0.0, %v252
    %v254 = vpop.f32.mrb[0].mxu0
    %255 = vmatprep.mubr.f32.mxu0 0.0
    %256 = vmatmul.mubr.f32.gmra.mrb[0].mxu0 %v174
    %v257 = vpop.f32.mrb[0].mxu0
    %v258 = vadd.f32 0.0, %v257
    %v259 = vpop.f32.mrb[0].mxu0
    %260 = vdwg.mxu0
    %v261 = vadd.f32 %v145, %v243
    %v262 = vadd.f32 %v146, %v248
    %v263 = vadd.f32 %v147, %v253
    %v264 = vadd.f32 %v148, %v258
    %v265 = vrot.slane %v32, 2
    %v266 = vrot.slane %v33, 2
    %v267 = vrot.slane %v34, 2
    %v268 = vrot.slane %v35, 2
    %vm269 = vcmp.lt.s32.totalorder %v154, 6
    %v270 = vsel %vm269, %v267, %v268
    %v271 = vsel %vm269, %v266, %v267
    %v272 = vsel %vm269, %v265, %v266
    %v273 = vsel %vm269, %v268, %v265
    %v274 = vld [vmem:[#allocation2 + $0x40] sm:$0xff]
    %v275 = vld [vmem:[#allocation2 + $0x48] sm:$0xff]
    %v276 = vld [vmem:[#allocation2 + $0x50] sm:$0xff]
    %v277 = vld [vmem:[#allocation2 + $0x58] sm:$0xff]
    %v279 = vsel %vm47, %v272, 0
    %v282 = vsel %vm47, %v271, 0
    %v285 = vsel %vm47, %v270, 0
    %v288 = vsel %vm47, %v273, 0
    %290 = vmatprep.subr.mxu0 0.0
    %291 = vmatpush1.msra.mxu0 %v274
    %292 = vmatprep.subr.mxu0 0.0
    %293 = vmatpush1.msra.mxu0 %v275
    %294 = vmatprep.subr.mxu0 0.0
    %295 = vmatpush1.msra.mxu0 %v276
    %296 = vmatprep.subr.mxu0 0.0
    %297 = vmatpush1.msra.mxu0 %v277
    %298 = vmatprep.subr.mxu0 0.0
    %299 = vmatpush1.msra.mxu0 0.0
    %300 = vmatprep.subr.mxu0 0.0
    %301 = vmatpush1.msra.mxu0 0.0
    %302 = vmatprep.subr.mxu0 0.0
    %303 = vmatpush1.msra.mxu0 0.0
    %304 = vmatprep.subr.mxu0 0.0
    %305 = vmatpush1.msra.mxu0 0.0
    %306 = vmatprep.subr.mxu0 0.0
    %307 = vmatpush1.msra.mxu0 0.0
    %308 = vmatprep.subr.mxu0 0.0
    %309 = vmatpush1.msra.mxu0 0.0
    %310 = vmatprep.subr.mxu0 0.0
    %311 = vmatpush1.msra.mxu0 0.0
    %312 = vmatprep.subr.mxu0 0.0
    %313 = vmatpush1.msra.mxu0 0.0
    %314 = vmatprep.subr.mxu0 0.0
    %315 = vmatpush1.msra.mxu0 0.0
    %316 = vmatprep.subr.mxu0 0.0
    %317 = vmatpush1.msra.mxu0 0.0
    %318 = vmatprep.subr.mxu0 0.0
    %319 = vmatpush1.msra.mxu0 0.0
    %320 = vmatprep.subr.mxu0 0.0
    %321 = vmatpush1.msra.mxu0 0.0
    %322 = vmatprep.subr.mxu0 0.0
    %323 = vmatpush1.msra.mxu0 0.0
    %324 = vmatprep.subr.mxu0 0.0
    %325 = vmatpush1.msra.mxu0 0.0
    %326 = vmatprep.subr.mxu0 0.0
    %327 = vmatpush1.msra.mxu0 0.0
    %328 = vmatprep.subr.mxu0 0.0
    %329 = vmatpush1.msra.mxu0 0.0
    %330 = vmatprep.subr.mxu0 0.0
    %331 = vmatpush1.msra.mxu0 0.0
    %332 = vmatprep.subr.mxu0 0.0
    %333 = vmatpush1.msra.mxu0 0.0
    %334 = vmatprep.subr.mxu0 0.0
    %335 = vmatpush1.msra.mxu0 0.0
    %336 = vmatprep.subr.mxu0 0.0
    %337 = vmatpush1.msra.mxu0 0.0
    %338 = vmatprep.subr.mxu0 0.0
    %339 = vmatpush1.msra.mxu0 0.0
    %340 = vmatprep.subr.mxu0 0.0
    %341 = vmatpush1.msra.mxu0 0.0
    %342 = vmatprep.subr.mxu0 0.0
    %343 = vmatpush1.msra.mxu0 0.0
    %344 = vmatprep.subr.mxu0 0.0
    %345 = vmatpush1.msra.mxu0 0.0
    %346 = vmatprep.subr.mxu0 0.0
    %347 = vmatpush1.msra.mxu0 0.0
    %348 = vmatprep.subr.mxu0 0.0
    %349 = vmatpush1.msra.mxu0 0.0
    %350 = vmatprep.subr.mxu0 0.0
    %351 = vmatpush1.msra.mxu0 0.0
    %352 = vmatprep.subr.mxu0 0.0
    %353 = vmatpush1.msra.mxu0 0.0
    %354 = vmatprep.mubr.f32.mxu0 0.0
    %355 = vmatmul.mubr.f32.gmra.mrb[0].mxu0 %v279
    %v356 = vpop.f32.mrb[0].mxu0
    %v357 = vadd.f32 0.0, %v356
    %v358 = vpop.f32.mrb[0].mxu0
    %359 = vmatprep.mubr.f32.mxu0 0.0
    %360 = vmatmul.mubr.f32.gmra.mrb[0].mxu0 %v282
    %v361 = vpop.f32.mrb[0].mxu0
    %v362 = vadd.f32 0.0, %v361
    %v363 = vpop.f32.mrb[0].mxu0
    %364 = vmatprep.mubr.f32.mxu0 0.0
    %365 = vmatmul.mubr.f32.gmra.mrb[0].mxu0 %v285
    %v366 = vpop.f32.mrb[0].mxu0
    %v367 = vadd.f32 0.0, %v366
    %v368 = vpop.f32.mrb[0].mxu0
    %369 = vmatprep.mubr.f32.mxu0 0.0
    %370 = vmatmul.mubr.f32.gmra.mrb[0].mxu0 %v288
    %v371 = vpop.f32.mrb[0].mxu0
    %v372 = vadd.f32 0.0, %v371
    %v373 = vpop.f32.mrb[0].mxu0
    %374 = vdwg.mxu0
    %v375 = vadd.f32 %v261, %v357
    %v376 = vadd.f32 %v262, %v362
    %v377 = vadd.f32 %v263, %v367
    %v378 = vadd.f32 %v264, %v372
    %v379 = vrot.slane %v32, 3
    %v380 = vrot.slane %v33, 3
    %v381 = vrot.slane %v34, 3
    %v382 = vrot.slane %v35, 3
    %vm383 = vcmp.lt.s32.totalorder %v154, 5
    %v384 = vsel %vm383, %v381, %v382
    %v385 = vsel %vm383, %v380, %v381
    %v386 = vsel %vm383, %v379, %v380
    %v387 = vsel %vm383, %v382, %v379
    %v388 = vld [vmem:[#allocation2 + $0x60] sm:$0xff]
    %v389 = vld [vmem:[#allocation2 + $0x68] sm:$0xff]
    %v390 = vld [vmem:[#allocation2 + $0x70] sm:$0xff]
    %v391 = vld [vmem:[#allocation2 + $0x78] sm:$0xff]
    %v393 = vsel %vm47, %v386, 0
    %v396 = vsel %vm47, %v385, 0
    %v399 = vsel %vm47, %v384, 0
    %v402 = vsel %vm47, %v387, 0
    %404 = vmatprep.subr.mxu0 0.0
    %405 = vmatpush1.msra.mxu0 %v388
    %406 = vmatprep.subr.mxu0 0.0
    %407 = vmatpush1.msra.mxu0 %v389
    %408 = vmatprep.subr.mxu0 0.0
    %409 = vmatpush1.msra.mxu0 %v390
    %410 = vmatprep.subr.mxu0 0.0
    %411 = vmatpush1.msra.mxu0 %v391
    %412 = vmatprep.subr.mxu0 0.0
    %413 = vmatpush1.msra.mxu0 0.0
    %414 = vmatprep.subr.mxu0 0.0
    %415 = vmatpush1.msra.mxu0 0.0
    %416 = vmatprep.subr.mxu0 0.0
    %417 = vmatpush1.msra.mxu0 0.0
    %418 = vmatprep.subr.mxu0 0.0
    %419 = vmatpush1.msra.mxu0 0.0
    %420 = vmatprep.subr.mxu0 0.0
    %421 = vmatpush1.msra.mxu0 0.0
    %422 = vmatprep.subr.mxu0 0.0
    %423 = vmatpush1.msra.mxu0 0.0
    %424 = vmatprep.subr.mxu0 0.0
    %425 = vmatpush1.msra.mxu0 0.0
    %426 = vmatprep.subr.mxu0 0.0
    %427 = vmatpush1.msra.mxu0 0.0
    %428 = vmatprep.subr.mxu0 0.0
    %429 = vmatpush1.msra.mxu0 0.0
    %430 = vmatprep.subr.mxu0 0.0
    %431 = vmatpush1.msra.mxu0 0.0
    %432 = vmatprep.subr.mxu0 0.0
    %433 = vmatpush1.msra.mxu0 0.0
    %434 = vmatprep.subr.mxu0 0.0
    %435 = vmatpush1.msra.mxu0 0.0
    %436 = vmatprep.subr.mxu0 0.0
    %437 = vmatpush1.msra.mxu0 0.0
    %438 = vmatprep.subr.mxu0 0.0
    %439 = vmatpush1.msra.mxu0 0.0
    %440 = vmatprep.subr.mxu0 0.0
    %441 = vmatpush1.msra.mxu0 0.0
    %442 = vmatprep.subr.mxu0 0.0
    %443 = vmatpush1.msra.mxu0 0.0
    %444 = vmatprep.subr.mxu0 0.0
    %445 = vmatpush1.msra.mxu0 0.0
    %446 = vmatprep.subr.mxu0 0.0
    %447 = vmatpush1.msra.mxu0 0.0
    %448 = vmatprep.subr.mxu0 0.0
    %449 = vmatpush1.msra.mxu0 0.0
    %450 = vmatprep.subr.mxu0 0.0
    %451 = vmatpush1.msra.mxu0 0.0
    %452 = vmatprep.subr.mxu0 0.0
    %453 = vmatpush1.msra.mxu0 0.0
    %454 = vmatprep.subr.mxu0 0.0
    %455 = vmatpush1.msra.mxu0 0.0
    %456 = vmatprep.subr.mxu0 0.0
    %457 = vmatpush1.msra.mxu0 0.0
    %458 = vmatprep.subr.mxu0 0.0
    %459 = vmatpush1.msra.mxu0 0.0
    %460 = vmatprep.subr.mxu0 0.0
    %461 = vmatpush1.msra.mxu0 0.0
    %462 = vmatprep.subr.mxu0 0.0
    %463 = vmatpush1.msra.mxu0 0.0
    %464 = vmatprep.subr.mxu0 0.0
    %465 = vmatpush1.msra.mxu0 0.0
    %466 = vmatprep.subr.mxu0 0.0
    %467 = vmatpush1.msra.mxu0 0.0
    %468 = vmatprep.mubr.f32.mxu0 0.0
    %469 = vmatmul.mubr.f32.gmra.mrb[0].mxu0 %v393
    %v470 = vpop.f32.mrb[0].mxu0
    %v471 = vadd.f32 0.0, %v470
    %v472 = vpop.f32.mrb[0].mxu0
    %473 = vmatprep.mubr.f32.mxu0 0.0
    %474 = vmatmul.mubr.f32.gmra.mrb[0].mxu0 %v396
    %v475 = vpop.f32.mrb[0].mxu0
    %v476 = vadd.f32 0.0, %v475
    %v477 = vpop.f32.mrb[0].mxu0
    %478 = vmatprep.mubr.f32.mxu0 0.0
    %479 = vmatmul.mubr.f32.gmra.mrb[0].mxu0 %v399
    %v480 = vpop.f32.mrb[0].mxu0
    %v481 = vadd.f32 0.0, %v480
    %v482 = vpop.f32.mrb[0].mxu0
    %483 = vmatprep.mubr.f32.mxu0 0.0
    %484 = vmatmul.mubr.f32.gmra.mrb[0].mxu0 %v402
    %v485 = vpop.f32.mrb[0].mxu0
    %v486 = vadd.f32 0.0, %v485
    %v487 = vpop.f32.mrb[0].mxu0
    %488 = vdwg.mxu0
    %v489 = vadd.f32 %v375, %v471
    %v490 = vadd.f32 %v376, %v476
    %v491 = vadd.f32 %v377, %v481
    %v492 = vadd.f32 %v378, %v486
    %v493 = vmax.f32 %v489, 0.0
    %v494 = vmax.f32 %v490, 0.0
    %v495 = vmax.f32 %v491, 0.0
    %v496 = vmax.f32 %v492, 0.0
    %v497 = vld [vmem:[%s1] sm:$0xff]
    %v498 = vld [vmem:[%s1 + $0x8] sm:$0xff]
    %v499 = vld [vmem:[%s1 + $0x10] sm:$0xff]
    %v500 = vld [vmem:[%s1 + $0x18] sm:$0xff]
    %502 = vset.pattern.permute.xlu0 0
    %503 = vperm.xlu0 %502, %v497
    %v504 = vpop.permute.xlu0 %503
    %507 = vset.pattern.permute.xlu0 0
    %508 = vperm.xlu0 %507, %v498
    %v509 = vpop.permute.xlu0 %508
    %512 = vset.pattern.permute.xlu0 0
    %513 = vperm.xlu0 %512, %v499
    %v514 = vpop.permute.xlu0 %513
    %517 = vset.pattern.permute.xlu0 0
    %518 = vperm.xlu0 %517, %v500
    %v519 = vpop.permute.xlu0 %518
    %v521 = vmul.f32 %v493, %v504
    %v522 = vmul.f32 %v494, %v509
    %v523 = vmul.f32 %v495, %v514
    %v524 = vmul.f32 %v496, %v519
    %v525 = vmax.f32 %v521, %v522
    %v526 = vrot.slane %v525, 4
    %v527 = vmax.f32 %v525, %v526
    %v528 = vrot.slane %v527, 2
    %v529 = vmax.f32 %v527, %v528
    %v530 = vrot.slane %v529, 1
    %v531 = vmax.f32 %v529, %v530
    %v532 = vmax.f32 %v523, %v524
    %v533 = vrot.slane %v532, 4
    %v534 = vmax.f32 %v532, %v533
    %v535 = vrot.slane %v534, 2
    %v536 = vmax.f32 %v534, %v535
    %v537 = vrot.slane %v536, 1
    %v538 = vmax.f32 %v536, %v537
    %vm541 = vcmask 1041409
    %v542 = vsel %vm541, %v538, %v531
    %544 = vst [vmem:[#allocation5] sm:$0x3] %v542
    // Predicated region
    $region22: #{tpu_custom_call.1} parent=1 // pred_check
      _
    $region23: #{tpu_custom_call.1} parent=1 // pred_check_branch
      %546 = sbr.rel (0) target = $region25
    $region24: #{tpu_custom_call.1} parent=1 // pred_region
      %s548 = ssub.s32 32, 32
      %549 = vsyncadd [#allocation4], %s548
      %s551 = sshll.u32 [#allocation5], 4
      %s552 = int_to_ptr.vmem [resolvable:$true] %s551
      %554 = dma.vmem_to_hbm [thread:$0]  %s552, 32, %s4, [#allocation4]
    $region25: #{tpu_custom_call.1} parent=1 // pred_fallthru
      _
    // Predicated region
    $region26: #{tpu_custom_call.1} parent=1 // pred_check
      _
    $region27: #{tpu_custom_call.1} parent=1 // pred_check_branch
      %556 = sbr.rel (0) target = $region29
    $region28: #{tpu_custom_call.1} parent=1 // pred_region
      %557 = dma.done [#allocation4], 32
    $region29: #{tpu_custom_call.1} parent=1 // pred_fallthru
      _
    %558 = vsyncpa [#allocation3], 1
    %559 = vsyncpa [#allocation4], 1

</llo_original>
